<compile_context>
chip_gen: v7x
topology: tpu7x:2x2x1
jax: 0.10.0
libtpu: 0.0.40
codegen_flags: <defaults>
</compile_context>

<pallas_src>
import functools

import jax
import jax.numpy as jnp
from jax.experimental import pallas as pl
from jax.experimental.pallas import tpu as pltpu


# ----------------------------------------------------------------------------
# One-time probes / hardware queries
# ----------------------------------------------------------------------------
def _roll_probe_kernel(x_ref, o_ref):
    o_ref[...] = pltpu.roll(x_ref[...], 3, axis=1)


@functools.lru_cache(maxsize=None)
def _pltpu_roll_sign():
    """Validate pltpu.roll's shift convention against jnp.roll (runs once).

    Returns +1 if pltpu.roll(x, s) == jnp.roll(x, s), -1 if it equals
    jnp.roll(x, -s), and 0 to request the jnp.roll fallback (safety net so an
    unexpected convention can never silently flip the conv spatially).
    """
    l = 256  # two vregs wide so multi-vreg rolls are exercised too
    x = jnp.broadcast_to(jax.lax.iota(jnp.float32, l)[None, :], (8, l))
    out = pl.pallas_call(
        _roll_probe_kernel,
        out_shape=jax.ShapeDtypeStruct((8, l), jnp.float32),
    )(x)
    if bool(jnp.array_equal(out, jnp.roll(x, 3, axis=1))):
        return 1
    if bool(jnp.array_equal(out, jnp.roll(x, -3, axis=1))):
        return -1
    return 0


def _num_tensorcores():
    """Best-effort TensorCores-per-chip (2 on v7x, 1 on v5e/v6e)."""
    try:
        info = pltpu.get_tpu_info()
    except Exception:
        return 1
    for name in ("num_cores", "core_count", "num_tensorcores", "tensor_cores",
                 "cores_per_chip", "tensorcores_per_chip"):
        v = getattr(info, name, None)
        if isinstance(v, int) and not isinstance(v, bool) and 1 <= v <= 8:
            return v
    return 1


# ----------------------------------------------------------------------------
# Kernel
# ----------------------------------------------------------------------------
def _block_kernel(x_ref, dwp_ref, pwp_ref, o_ref, *,
                  H, W, has_residual, compute_dtype, roll_sign):
    # x_ref  : (1, C, L)       one batch group, L = bt*H*W on the lane axis
    # dwp_ref: (C, 10)         [3x3 dw weights (bn2 scale folded) | folded bn2 bias]
    # pwp_ref: (C_out, C + 1)  [1x1 pw weights (bn3 scale folded) | folded bn3 bias]
    # o_ref  : (1, C_out, L)
    C = x_ref.shape[1]
    L = x_ref.shape[2]

    x = x_ref[0]                                   # (C, L) float32
    xc = x.astype(compute_dtype)

    # Hoisted parameter loads (one vector load each, sliced in-register).
    dwp = dwp_ref[...]
    wdw = dwp[:, :9].astype(compute_dtype)         # (C, 9), tap index = di*3 + dj
    b2 = dwp[:, 9:10]                              # (C, 1) float32

    # Border masks replace the zero padding of the 'same' 3x3 depthwise conv.
    # `row` is taken modulo H so images folded along the lane axis never read
    # across their neighbours (the rolls wrap, the masks zero exactly those
    # wrapped reads).  W and H are compile-time powers of two -> and/shift.
    pos = jax.lax.broadcasted_iota(jnp.int32, (1, L), 1)
    col = pos % W
    row = (pos // W) % H
    left_ok = col >= 1
    right_ok = col <= W - 2
    up_ok = row >= 1
    down_ok = row <= H - 2
    tap_mask = {                                   # precombined, one select/tap
        (-1, -1): jnp.logical_and(up_ok, left_ok),
        (-1, 0): up_ok,
        (-1, 1): jnp.logical_and(up_ok, right_ok),
        (0, -1): left_ok,
        (0, 1): right_ok,
        (1, -1): jnp.logical_and(down_ok, left_ok),
        (1, 0): down_ok,
        (1, 1): jnp.logical_and(down_ok, right_ok),
    }

    # --- depthwise 3x3, stride 1, padding 1: 8 XLU lane rotations + VPU MACs,
    #     f32 accumulation, accumulator seeded from the (unmasked) centre tap.
    acc = (wdw[:, 4:5] * xc).astype(jnp.float32)
    for oi in (-1, 0, 1):
        for oj in (-1, 0, 1):
            if oi == 0 and oj == 0:
                continue
            off = oi * W + oj                      # flat source offset
            if roll_sign == 0:
                tap = jnp.roll(xc, -off, axis=1)   # safety fallback
            else:
                tap = pltpu.roll(xc, ((-off) * roll_sign) % L, axis=1)
            tap = jnp.where(tap_mask[(oi, oj)], tap, 0)
            k = 3 * (oi + 1) + (oj + 1)
            acc = acc + (wdw[:, k:k + 1] * tap).astype(jnp.float32)

    # --- folded bn2 bias + ReLU (f32) ---
    y = jnp.maximum(acc + b2, 0.0)

    # --- SE: se_layer=None -> nn.Identity(), nothing to do ---

    # --- pointwise 1x1 conv: (C_out, C) @ (C, L) on the MXU + folded bn3 bias ---
    pwp = pwp_ref[...]
    wpw = pwp[:, :C].astype(compute_dtype)
    b3 = pwp[:, C:C + 1]                           # (C_out, 1) float32
    z = jnp.dot(wpw, y.astype(compute_dtype),
                preferred_element_type=jnp.float32) + b3

    # --- residual (in_chs == out_chs, stride == 1, not noskip, drop_path=0) ---
    if has_residual:
        z = z + x                                  # f32 residual add

    o_ref[0] = z.astype(o_ref.dtype)


# ----------------------------------------------------------------------------
# Wrapper
# ----------------------------------------------------------------------------
def inverted_residual_no_expansion(x_nchw, params, *, stride=1, noskip=False,
                                   eps=1e-5, compute_dtype=jnp.float32,
                                   groups=None):
    """InvertedResidualNoExpansion forward (eval-mode BN).  x_nchw: (B, C, H, W).

    Only the module defaults are implemented (3x3 depthwise, stride 1,
    dilation 1, no SE).  compute_dtype=jnp.bfloat16 enables the bf16 vector
    path recommended for v6e/v7x (keep the float32 default on v5e).
    """
    (wdw, bdw, g2, be2, m2, v2, wpw, bpw, g3, be3, m3, v3) = params
    if stride != 1:
        # TODO(synk): stride > 1 depthwise conv (strided output layout) is not
        # implemented; the module default is stride=1.
        raise NotImplementedError("only stride=1 is implemented")

    C = wdw.shape[-1]
    C_out = wpw.shape[-1]
    B, Cin, H, W = x_nchw.shape
    assert Cin == C, "input channels must match depthwise weight channels"
    HW = H * W

    # Fold BatchNorm (eval mode) + conv biases into the conv weights and one
    # per-channel bias each, then pack the small per-channel params so the
    # kernel sees 3 inputs (x, dw-pack, pw-pack) instead of 5.
    s2 = g2 / jnp.sqrt(v2 + eps)
    b2 = be2 + s2 * (bdw - m2)
    s3 = g3 / jnp.sqrt(v3 + eps)
    b3 = be3 + s3 * (bpw - m3)
    dw_packed = jnp.concatenate(
        [jnp.transpose((wdw * s2).reshape(9, C)), b2.reshape(C, 1)], axis=1)       # (C, 10)
    pw_packed = jnp.concatenate(
        [jnp.transpose(wpw * s3[None, :]), b3.reshape(C_out, 1)], axis=1)          # (C_out, C+1)

    # timm: has_residual = (in_chs == out_chs and stride == 1) and not noskip;
    # drop_path_rate = 0 -> plain add.
    has_residual = (C == C_out and stride == 1) and (not noskip)

    # Batch folding: each grid step processes bt images laid out contiguously
    # on the lane axis -> one step on single-TC chips (v5e/v6e), two parallel
    # steps on v7x so both TensorCores get work.
    if groups is None:
        tc = _num_tensorcores()
        groups = tc if (tc > 1 and B % tc == 0) else 1
    assert B % groups == 0, "batch must divide the number of grid steps"
    bt = B // groups
    L = bt * HW                                    # lane axis, multiple of 128

    x_g = (x_nchw.reshape(groups, bt, C, HW)
           .transpose(0, 2, 1, 3)
           .reshape(groups, C, L))

    kernel = functools.partial(
        _block_kernel, H=H, W=W, has_residual=has_residual,
        compute_dtype=compute_dtype, roll_sign=_pltpu_roll_sign())

    out_g = pl.pallas_call(
        kernel,
        out_shape=jax.ShapeDtypeStruct((groups, C_out, L), x_nchw.dtype),
        grid_spec=pltpu.PrefetchScalarGridSpec(
            num_scalar_prefetch=0,
            grid=(groups,),
            in_specs=[
                pl.BlockSpec((1, C, L), lambda g: (g, 0, 0)),        # x (lane-dense)
                pl.BlockSpec((C, 10), lambda g: (0, 0)),             # dw weights | bn2 bias
                pl.BlockSpec((C_out, C + 1), lambda g: (0, 0)),      # pw weights | bn3 bias
            ],
            out_specs=pl.BlockSpec((1, C_out, L), lambda g: (g, 0, 0)),
        ),
        compiler_params=pltpu.CompilerParams(
            dimension_semantics=("parallel",)),
    )(x_g, dw_packed, pw_packed)

    # TODO(synk): for production-sized feature maps, additionally tile H with a
    # 2-row halo via the index_map (keep the lane axis a multiple of 128), and
    # when this block is one layer of a larger network fuse several consecutive
    # blocks into one pallas_call to amortize dispatch / pipeline-prologue cost.

    return (out_g.reshape(groups, C_out, bt, HW)
            .transpose(0, 2, 1, 3)
            .reshape(B, C_out, H, W))


# ----------------------------------------------------------------------------
# Pure-JAX reference for verification
# ----------------------------------------------------------------------------
def _reference(x_nchw, params, eps=1e-5):
    (wdw, bdw, g2, be2, m2, v2, wpw, bpw, g3, be3, m3, v3) = params
    C = wdw.shape[-1]
    x = jnp.transpose(x_nchw, (0, 2, 3, 1))                       # NHWC
    y = jax.lax.conv_general_dilated(
        x, wdw.reshape(3, 3, 1, C), window_strides=(1, 1), padding="SAME",
        feature_group_count=C,
        dimension_numbers=("NHWC", "HWIO", "NHWC")) + bdw
    y = (y - m2) / jnp.sqrt(v2 + eps) * g2 + be2
    y = jnp.maximum(y, 0.0)
    y = jnp.einsum("bhwc,cd->bhwd", y, wpw) + bpw
    y = (y - m3) / jnp.sqrt(v3 + eps) * g3 + be3
    y = y + x
    return jnp.transpose(y, (0, 3, 1, 2))


if __name__ == "__main__":
    B, C, H, W = 2, 32, 16, 16   # in_chs == out_chs -> residual path active
    C_out = C

    key = jax.random.PRNGKey(0)
    keys = jax.random.split(key, 13)
    x = jax.random.normal(keys[0], (B, C, H, W), jnp.float32)

    params = (
        jax.random.normal(keys[1], (3, 3, C), jnp.float32) * 0.1,     # conv_dw weight
        jax.random.normal(keys[2], (C,), jnp.float32) * 0.1,          # conv_dw bias
        1.0 + 0.1 * jax.random.normal(keys[3], (C,), jnp.float32),    # bn2 gamma
        0.1 * jax.random.normal(keys[4], (C,), jnp.float32),          # bn2 beta
        0.1 * jax.random.normal(keys[5], (C,), jnp.float32),          # bn2 running_mean
        1.0 + 0.1 * jnp.abs(jax.random.normal(keys[6], (C,), jnp.float32)),       # bn2 running_var
        jax.random.normal(keys[7], (C, C_out), jnp.float32) * 0.1,    # conv_pwl weight
        jax.random.normal(keys[8], (C_out,), jnp.float32) * 0.1,      # conv_pwl bias
        1.0 + 0.1 * jax.random.normal(keys[9], (C_out,), jnp.float32),    # bn3 gamma
        0.1 * jax.random.normal(keys[10], (C_out,), jnp.float32),         # bn3 beta
        0.1 * jax.random.normal(keys[11], (C_out,), jnp.float32),         # bn3 running_mean
        1.0 + 0.1 * jnp.abs(jax.random.normal(keys[12], (C_out,), jnp.float32)),  # bn3 running_var
    )

    ref = jax.block_until_ready(_reference(x, params))

    # Default f32 path (correct on every TPU generation).
    out = jax.block_until_ready(inverted_residual_no_expansion(x, params))
    assert out.shape == (B, C_out, H, W)
    assert jnp.allclose(out, ref, rtol=1e-4, atol=1e-4), \
        float(jnp.max(jnp.abs(out - ref)))

    # bf16 vector path (perf-review recommendation for v6e/v7x; f32 accumulate
    # and f32 residual add, so only a bf16-level tolerance is expected).
    out_bf16 = jax.block_until_ready(
        inverted_residual_no_expansion(x, params, compute_dtype=jnp.bfloat16))
    assert jnp.allclose(out_bf16, ref, rtol=5e-2, atol=5e-2), \
        float(jnp.max(jnp.abs(out_bf16 - ref)))

    print("KERNEL_OK")
</pallas_src>

<mosaic_0001>
module attributes {stable_mosaic.version = 11 : i64} {
  func.func @_roll_probe_kernel(%arg0: memref<8x256xf32, #tpu.memory_space<vmem>>, %arg1: memref<8x256xf32, #tpu.memory_space<vmem>>) attributes {dimension_semantics = [], scalar_prefetch = 0 : i64, scratch_operands = 0 : i64, tpu.core_type = #tpu.core_type<tc>} {
    %c0 = arith.constant 0 : index
    %c0_0 = arith.constant 0 : index
    %0 = vector.load %arg0[%c0, %c0_0] : memref<8x256xf32, #tpu.memory_space<vmem>>, vector<8x256xf32>
    %c3_i32 = arith.constant 3 : i32
    %1 = tpu.dynamic_rotate %0 by %c3_i32 dim 1 : vector<8x256xf32>, i32 -> vector<8x256xf32>
    %c0_1 = arith.constant 0 : index
    %c0_2 = arith.constant 0 : index
    %2 = vector.load %arg1[%c0_1, %c0_2] : memref<8x256xf32, #tpu.memory_space<vmem>>, vector<8x256xf32>
    tpu.vector_store %arg1[%c0_1, %c0_2], %1 {strides = array<i32>} : memref<8x256xf32, #tpu.memory_space<vmem>>, vector<8x256xf32>,
    return
  }
}

</mosaic_0001>

<llo_original>
// kernel: tpu_custom_call.1
$region0: #{tpu_custom_call.1}
  #allocation0 [shape = 'u32[]', space=smem, size = 0x4, offset = 0x4, fixed_abs, tag = 'smem constant byte address 0x4 - core index']
  #allocation1 [shape = 'u32[144,128]{1,0:T(1,128)}', space=vmem, size = 0x12000, scoped, tag = 'internal scratch']
  %s0 = inlined_call_operand.hbm [shape: f32[8,256], index: 0, kind: input, shape index: {}]
  %s1 = inlined_call_operand.hbm [shape: f32[8,256], index: 1, kind: output, shape index: {}]
  %s2 = sld [smem:[#allocation0]]
  $region18: #{tpu_custom_call.1} parent=0
    _
  %s4 = ssub.s32 1, %s2
  %s5 = scalar_select 0, %s4, %s2
  $region1: #{tpu_custom_call.1} parent=0
    #allocation2 [shape = 'u8[8192]{0}', space=vmem, size = 0x2000, scoped, tag = 'input window, operand 0, single buffered']
    #allocation3 [shape = 's32[1]{0}', space=sflag, size = 0x4, scoped, tag = 'scoped memory for tpu_custom_call.1']
    #allocation4 [shape = 's32[1]{0}', space=sflag, size = 0x4, scoped, tag = 'scoped memory for tpu_custom_call.1']
    #allocation5 [shape = 'u8[8192]{0}', space=vmem, size = 0x2000, scoped, tag = 'output window, operand 0, single buffered']
    %6 = vsyncpa [#allocation3], 0
    %7 = vsyncpa [#allocation4], 0
    // Predicated region
    $region2: #{tpu_custom_call.1} parent=1 // pred_check
      _
    $region3: #{tpu_custom_call.1} parent=1 // pred_check_branch
      %9 = sbr.rel (0) target = $region5
    $region4: #{tpu_custom_call.1} parent=1 // pred_region
      %s11 = ssub.s32 256, 256
      %12 = vsyncadd [#allocation3], %s11
      %s14 = sshll.u32 [#allocation2], 4
      %s15 = int_to_ptr.vmem [resolvable:$true] %s14
      %17 = dma.hbm_to_vmem [thread:$0]  %s0, 256, %s15, [#allocation3]
    $region5: #{tpu_custom_call.1} parent=1 // pred_fallthru
      _
    // Predicated region
    $region6: #{tpu_custom_call.1} parent=1 // pred_check
      _
    $region7: #{tpu_custom_call.1} parent=1 // pred_check_branch
      %19 = sbr.rel (0) target = $region9
    $region8: #{tpu_custom_call.1} parent=1 // pred_region
      %20 = dma.done [#allocation3], 256
    $region9: #{tpu_custom_call.1} parent=1 // pred_fallthru
      _
    %v21 = vld [vmem:[#allocation2] sm:$0xff]
    %v22 = vld [vmem:[#allocation2 + $0x8] sm:$0xff]
    %23 = vrot.lane.b32.xlu0 %v21, 3
    %v24 = vpop.permute.xlu0 %23
    %25 = vrot.lane.b32.xlu0 %v22, 3
    %v26 = vpop.permute.xlu0 %25
    %v27 = vlaneseq
    %v28 = vand.u32 %v27, 127
    %vm29 = vcmp.lt.s32.totalorder %v28, 3
    %v30 = vsel %vm29, %v24, %v26
    %v31 = vsel %vm29, %v26, %v24
    %32 = vst [vmem:[#allocation5] sm:$0xff] %v31
    %33 = vst [vmem:[#allocation5 + $0x8] sm:$0xff] %v30
    // Predicated region
    $region10: #{tpu_custom_call.1} parent=1 // pred_check
      _
    $region11: #{tpu_custom_call.1} parent=1 // pred_check_branch
      %35 = sbr.rel (0) target = $region13
    $region12: #{tpu_custom_call.1} parent=1 // pred_region
      %s37 = ssub.s32 256, 256
      %38 = vsyncadd [#allocation4], %s37
      %s40 = sshll.u32 [#allocation5], 4
      %s41 = int_to_ptr.vmem [resolvable:$true] %s40
      %43 = dma.vmem_to_hbm [thread:$0]  %s41, 256, %s1, [#allocation4]
    $region13: #{tpu_custom_call.1} parent=1 // pred_fallthru
      _
    // Predicated region
    $region14: #{tpu_custom_call.1} parent=1 // pred_check
      _
    $region15: #{tpu_custom_call.1} parent=1 // pred_check_branch
      %45 = sbr.rel (0) target = $region17
    $region16: #{tpu_custom_call.1} parent=1 // pred_region
      %46 = dma.done [#allocation4], 256
    $region17: #{tpu_custom_call.1} parent=1 // pred_fallthru
      _
    %47 = vsyncpa [#allocation3], 1
    %48 = vsyncpa [#allocation4], 1

</llo_original>
